<compile_context>
chip_gen: v6e
topology: v6e:2x2x1
jax: 0.10.0
libtpu: 0.0.40
codegen_flags: <defaults>
</compile_context>

<pallas_src>
import functools

import jax
import jax.numpy as jnp
from jax.experimental import pallas as pl
from jax.experimental.pallas import tpu as pltpu


def _round_up(x, m):
    return ((x + m - 1) // m) * m


def spatial_attention_kernel(x_ref, w1_ref, b1_ref, w2_ref, b2_ref, e_ref,
                             out_ref, attn_ref):
    # x_ref:    (tm, P*D)   P original rows folded into the 128-lane dim
    # w1_ref:   (P*D, P*H)  block-diagonal first linear weight (in, out) layout
    # b1_ref:   (1, P*H)
    # w2_ref:   (P*H, P)    block-diagonal second linear weight
    # b2_ref:   (1, P)
    # e_ref:    (P, P*D)    constant 0/1 broadcast matrix (group -> its D lanes)
    # out_ref:  (tm, P*D)
    # attn_ref: (tm, P)
    x = x_ref[...]

    # Linear(D -> H) + ReLU on the packed block-diagonal layout (MXU + VPU).
    h = jnp.dot(x, w1_ref[...], preferred_element_type=jnp.float32)
    h = jnp.maximum(h + b1_ref[...], 0.0)

    # Linear(H -> 1) per packed group + Sigmoid (tiny MXU op + EUP).
    logits = jnp.dot(h, w2_ref[...], preferred_element_type=jnp.float32)
    attn = jax.nn.sigmoid(logits + b2_ref[...])                       # (tm, P)

    # Broadcast each group's attention scalar across its D lanes with a
    # constant 0/1 matmul, then modulate x on the VPU (lane-dense store).
    attn_lanes = jnp.dot(attn, e_ref[...], preferred_element_type=jnp.float32)
    out_ref[...] = (x * attn_lanes.astype(x.dtype)).astype(out_ref.dtype)
    attn_ref[...] = attn.astype(attn_ref.dtype)


@functools.partial(jax.jit, static_argnames=("tm",))
def spatial_attention(x, w1, b1, w2, b2, *, tm=1024):
    """x: (B, S, D). Returns (attended (B,S,D), attn_weights (B,S,1)).

    w1: (D, H), b1: (H,), w2: (H, 1), b2: (1,)  -- (in, out) layout, i.e. the
    transpose of the PyTorch nn.Linear weight.
    """
    B, S, D = x.shape
    H = w1.shape[1]
    M = B * S

    # Lane packing factor: fold P rows of width D into one 128-wide packed row
    # so loads/stores use all 128 lanes (D=32 -> P=4). Fall back to P=1 when
    # D does not evenly tile 128.
    P = 128 // D if (D < 128 and 128 % D == 0) else 1

    tm = max(8, _round_up(tm, 8))
    Mp = pl.cdiv(M, P)                      # packed row count
    tm_eff = min(tm, _round_up(Mp, 8))      # don't over-pad tiny inputs
    Mp_pad = _round_up(Mp, tm_eff)
    M_pad = Mp_pad * P

    x2 = x.reshape(M, D)
    if M_pad != M:
        x2 = jnp.pad(x2, ((0, M_pad - M), (0, 0)))
    xp = x2.reshape(Mp_pad, P * D)

    # Block-diagonal packed parameters (built in the wrapper, tiny).
    f32 = jnp.float32
    eye = jnp.eye(P, dtype=f32)
    w1_bd = jnp.kron(eye, w1.astype(f32))                        # (P*D, P*H)
    w2_bd = jnp.kron(eye, w2.astype(f32))                        # (P*H, P)
    b1_bd = jnp.tile(b1.astype(f32).reshape(1, H), (1, P))       # (1, P*H)
    b2_bd = jnp.tile(b2.astype(f32).reshape(1, 1), (1, P))       # (1, P)
    e_bd = jnp.kron(eye, jnp.ones((1, D), dtype=f32))            # (P, P*D)

    grid = (Mp_pad // tm_eff,)

    itemsize = jnp.dtype(x.dtype).itemsize
    cost = pl.CostEstimate(
        flops=(2 * Mp_pad * (P * D) * (P * H)
               + 2 * Mp_pad * (P * H) * P
               + 2 * Mp_pad * P * (P * D)
               + Mp_pad * P * D),
        transcendentals=Mp_pad * P,
        bytes_accessed=2 * M_pad * D * itemsize + 4 * M_pad,
    )

    out_p, attn_p = pl.pallas_call(
        spatial_attention_kernel,
        out_shape=(
            jax.ShapeDtypeStruct((Mp_pad, P * D), x.dtype),
            jax.ShapeDtypeStruct((Mp_pad, P), jnp.float32),
        ),
        grid_spec=pltpu.PrefetchScalarGridSpec(
            num_scalar_prefetch=0,
            grid=grid,
            in_specs=[
                pl.BlockSpec((tm_eff, P * D), lambda i: (i, 0)),   # x slab
                pl.BlockSpec((P * D, P * H), lambda i: (0, 0)),    # w1 (resident)
                pl.BlockSpec((1, P * H), lambda i: (0, 0)),        # b1
                pl.BlockSpec((P * H, P), lambda i: (0, 0)),        # w2
                pl.BlockSpec((1, P), lambda i: (0, 0)),            # b2
                pl.BlockSpec((P, P * D), lambda i: (0, 0)),        # broadcast E
            ],
            out_specs=[
                pl.BlockSpec((tm_eff, P * D), lambda i: (i, 0)),
                pl.BlockSpec((tm_eff, P), lambda i: (i, 0)),
            ],
        ),
        compiler_params=pltpu.CompilerParams(
            dimension_semantics=("parallel",)),
        cost_estimate=cost,
    )(xp, w1_bd, b1_bd, w2_bd, b2_bd, e_bd)

    out = out_p.reshape(M_pad, D)[:M].reshape(B, S, D)
    attn = attn_p.reshape(M_pad, 1)[:M].reshape(B, S, 1).astype(x.dtype)
    return out, attn


if __name__ == "__main__":
    # Small shapes consistent with the module: input_dim=32 -> hidden=16.
    B, S, D = 2, 8, 32
    H = D // 2

    key = jax.random.PRNGKey(0)
    kx, k1, k2, k3, k4 = jax.random.split(key, 5)

    x = jax.random.normal(kx, (B, S, D), dtype=jnp.float32)
    # Deterministic synthetic params, stored as (in, out) = W.T of the
    # PyTorch nn.Linear weight, so the kernel computes x @ W1.
    w1 = jax.random.normal(k1, (D, H), dtype=jnp.float32) * 0.1
    b1 = jax.random.normal(k2, (H,), dtype=jnp.float32) * 0.1
    w2 = jax.random.normal(k3, (H, 1), dtype=jnp.float32) * 0.1
    b2 = jax.random.normal(k4, (1,), dtype=jnp.float32) * 0.1

    out, attn = spatial_attention(x, w1, b1, w2, b2)
    jax.block_until_ready((out, attn))

    # Pure-JAX reference check.
    h_ref = jnp.maximum(x @ w1 + b1, 0.0)
    attn_ref = jax.nn.sigmoid(h_ref @ w2 + b2)
    out_ref = x * attn_ref
    assert out.shape == (B, S, D) and attn.shape == (B, S, 1)
    assert jnp.allclose(out, out_ref, atol=1e-5, rtol=1e-5)
    assert jnp.allclose(attn, attn_ref, atol=1e-5, rtol=1e-5)

    # Ragged row count exercises the padding path (M=21 is not a multiple of
    # the 4-row lane pack or the row tile).
    xr = jax.random.normal(k1, (3, 7, D), dtype=jnp.float32)
    out_r, attn_r = spatial_attention(xr, w1, b1, w2, b2)
    jax.block_until_ready((out_r, attn_r))
    h_r = jnp.maximum(xr @ w1 + b1, 0.0)
    a_r = jax.nn.sigmoid(h_r @ w2 + b2)
    assert jnp.allclose(out_r, xr * a_r, atol=1e-5, rtol=1e-5)
    assert jnp.allclose(attn_r, a_r, atol=1e-5, rtol=1e-5)

    print("KERNEL_OK")
</pallas_src>

<mosaic_0001>
module attributes {stable_mosaic.version = 11 : i64} {
  func.func @spatial_attention_kernel(%arg0: i32, %arg1: memref<8x128xf32, #tpu.memory_space<vmem>>, %arg2: memref<128x64xf32, #tpu.memory_space<vmem>>, %arg3: memref<1x64xf32, #tpu.memory_space<vmem>>, %arg4: memref<64x4xf32, #tpu.memory_space<vmem>>, %arg5: memref<1x4xf32, #tpu.memory_space<vmem>>, %arg6: memref<4x128xf32, #tpu.memory_space<vmem>>, %arg7: memref<8x128xf32, #tpu.memory_space<vmem>>, %arg8: memref<8x4xf32, #tpu.memory_space<vmem>>) attributes {dimension_semantics = [#tpu.dimension_semantics<parallel>], iteration_bounds = array<i64: 1>, scalar_prefetch = 0 : i64, scratch_operands = 0 : i64, tpu.core_type = #tpu.core_type<tc>, window_params = [{transform_indices = @transform_0, window_bounds = array<i64: 8, 128>}, {pipeline_mode = #tpu.pipeline_mode<synchronous>, transform_indices = @transform_1, window_bounds = array<i64: 128, 64>}, {pipeline_mode = #tpu.pipeline_mode<synchronous>, transform_indices = @transform_2, window_bounds = array<i64: 1, 64>}, {pipeline_mode = #tpu.pipeline_mode<synchronous>, transform_indices = @transform_3, window_bounds = array<i64: 64, 4>}, {pipeline_mode = #tpu.pipeline_mode<synchronous>, transform_indices = @transform_4, window_bounds = array<i64: 1, 4>}, {pipeline_mode = #tpu.pipeline_mode<synchronous>, transform_indices = @transform_5, window_bounds = array<i64: 4, 128>}, {transform_indices = @transform_6, window_bounds = array<i64: 8, 128>}, {transform_indices = @transform_7, window_bounds = array<i64: 8, 4>}]} {
    %c0 = arith.constant 0 : index
    %c0_0 = arith.constant 0 : index
    %0 = vector.load %arg1[%c0, %c0_0] : memref<8x128xf32, #tpu.memory_space<vmem>>, vector<8x128xf32>
    %c0_1 = arith.constant 0 : index
    %c0_2 = arith.constant 0 : index
    %1 = vector.load %arg2[%c0_1, %c0_2] : memref<128x64xf32, #tpu.memory_space<vmem>>, vector<128x64xf32>
    %cst = arith.constant dense<0.000000e+00> : vector<8x64xf32>
    %2 = tpu.matmul %0, %1, %cst {dimension_numbers = #tpu.dot_dimension_numbers<[1], [0], [0], [1], [0, 0, 1, 1], [], []>} : vector<8x128xf32>, vector<128x64xf32>, vector<8x64xf32> -> vector<8x64xf32>
    %c0_3 = arith.constant 0 : index
    %c0_4 = arith.constant 0 : index
    %3 = vector.load %arg3[%c0_3, %c0_4] : memref<1x64xf32, #tpu.memory_space<vmem>>, vector<1x64xf32>
    %4 = vector.broadcast %3 : vector<1x64xf32> to vector<8x64xf32>
    %5 = arith.addf %2, %4 : vector<8x64xf32>
    %cst_5 = arith.constant 0.000000e+00 : f32
    %6 = vector.broadcast %cst_5 : f32 to vector<8x64xf32>
    %7 = arith.maximumf %5, %6 : vector<8x64xf32>
    %c0_6 = arith.constant 0 : index
    %c0_7 = arith.constant 0 : index
    %8 = vector.load %arg4[%c0_6, %c0_7] : memref<64x4xf32, #tpu.memory_space<vmem>>, vector<64x4xf32>
    %cst_8 = arith.constant dense<0.000000e+00> : vector<8x4xf32>
    %9 = tpu.matmul %7, %8, %cst_8 {dimension_numbers = #tpu.dot_dimension_numbers<[1], [0], [0], [1], [0, 0, 1, 1], [], []>} : vector<8x64xf32>, vector<64x4xf32>, vector<8x4xf32> -> vector<8x4xf32>
    %c0_9 = arith.constant 0 : index
    %c0_10 = arith.constant 0 : index
    %10 = vector.load %arg5[%c0_9, %c0_10] : memref<1x4xf32, #tpu.memory_space<vmem>>, vector<1x4xf32>
    %11 = vector.broadcast %10 : vector<1x4xf32> to vector<8x4xf32>
    %12 = arith.addf %9, %11 : vector<8x4xf32>
    %13 = arith.negf %12 : vector<8x4xf32>
    %14 = math.exp %13 : vector<8x4xf32>
    %cst_11 = arith.constant 1.000000e+00 : f32
    %15 = vector.broadcast %cst_11 : f32 to vector<8x4xf32>
    %16 = arith.addf %15, %14 : vector<8x4xf32>
    %17 = arith.divf %15, %16 : vector<8x4xf32>
    %c0_12 = arith.constant 0 : index
    %c0_13 = arith.constant 0 : index
    %18 = vector.load %arg6[%c0_12, %c0_13] : memref<4x128xf32, #tpu.memory_space<vmem>>, vector<4x128xf32>
    %cst_14 = arith.constant dense<0.000000e+00> : vector<8x128xf32>
    %19 = tpu.matmul %17, %18, %cst_14 {dimension_numbers = #tpu.dot_dimension_numbers<[1], [0], [0], [1], [0, 0, 1, 1], [], []>} : vector<8x4xf32>, vector<4x128xf32>, vector<8x128xf32> -> vector<8x128xf32>
    %20 = arith.mulf %0, %19 : vector<8x128xf32>
    %c0_15 = arith.constant 0 : index
    %c0_16 = arith.constant 0 : index
    %21 = vector.load %arg7[%c0_15, %c0_16] : memref<8x128xf32, #tpu.memory_space<vmem>>, vector<8x128xf32>
    tpu.vector_store %arg7[%c0_15, %c0_16], %20 {strides = array<i32>} : memref<8x128xf32, #tpu.memory_space<vmem>>, vector<8x128xf32>,
    %c0_17 = arith.constant 0 : index
    %c0_18 = arith.constant 0 : index
    %22 = vector.load %arg8[%c0_17, %c0_18] : memref<8x4xf32, #tpu.memory_space<vmem>>, vector<8x4xf32>
    tpu.vector_store %arg8[%c0_17, %c0_18], %17 {strides = array<i32>} : memref<8x4xf32, #tpu.memory_space<vmem>>, vector<8x4xf32>,
    return
  }
  func.func @transform_0(%arg0: i32) -> (i32, i32) {
    %c0_i32 = arith.constant 0 : i32
    %c0_i32_0 = arith.constant 0 : i32
    return %arg0, %c0_i32 : i32, i32
  }
  func.func @transform_1(%arg0: i32) -> (i32, i32) {
    %c0_i32 = arith.constant 0 : i32
    %c0_i32_0 = arith.constant 0 : i32
    %c0_i32_1 = arith.constant 0 : i32
    return %c0_i32, %c0_i32_0 : i32, i32
  }
  func.func @transform_2(%arg0: i32) -> (i32, i32) {
    %c0_i32 = arith.constant 0 : i32
    %c0_i32_0 = arith.constant 0 : i32
    %c0_i32_1 = arith.constant 0 : i32
    return %c0_i32, %c0_i32_0 : i32, i32
  }
  func.func @transform_3(%arg0: i32) -> (i32, i32) {
    %c0_i32 = arith.constant 0 : i32
    %c0_i32_0 = arith.constant 0 : i32
    %c0_i32_1 = arith.constant 0 : i32
    return %c0_i32, %c0_i32_0 : i32, i32
  }
  func.func @transform_4(%arg0: i32) -> (i32, i32) {
    %c0_i32 = arith.constant 0 : i32
    %c0_i32_0 = arith.constant 0 : i32
    %c0_i32_1 = arith.constant 0 : i32
    return %c0_i32, %c0_i32_0 : i32, i32
  }
  func.func @transform_5(%arg0: i32) -> (i32, i32) {
    %c0_i32 = arith.constant 0 : i32
    %c0_i32_0 = arith.constant 0 : i32
    %c0_i32_1 = arith.constant 0 : i32
    return %c0_i32, %c0_i32_0 : i32, i32
  }
  func.func @transform_6(%arg0: i32) -> (i32, i32) {
    %c0_i32 = arith.constant 0 : i32
    %c0_i32_0 = arith.constant 0 : i32
    return %arg0, %c0_i32 : i32, i32
  }
  func.func @transform_7(%arg0: i32) -> (i32, i32) {
    %c0_i32 = arith.constant 0 : i32
    %c0_i32_0 = arith.constant 0 : i32
    return %arg0, %c0_i32 : i32, i32
  }
}

</mosaic_0001>

<llo_original>
// kernel: spatial_attention.1
$region0: #{spatial_attention.1}
  #allocation0 [shape = 'u32[]', space=smem, size = 0x4, offset = 0x4, fixed_abs, tag = 'smem constant byte address 0x4 - core index']
  #allocation1 [shape = 'u32[144,128]{1,0:T(1,128)}', space=vmem, size = 0x12000, scoped, tag = 'internal scratch']
  %s0 = inlined_call_operand.vmem [shape: f32[8,128], index: 0, kind: input, shape index: {}]
  %s1 = inlined_call_operand.vmem [shape: f32[128,64], index: 1, kind: input, shape index: {}]
  %s2 = inlined_call_operand.vmem [shape: f32[1,64], index: 2, kind: input, shape index: {}]
  %s3 = inlined_call_operand.vmem [shape: f32[64,4], index: 3, kind: input, shape index: {}]
  %s4 = inlined_call_operand.vmem [shape: f32[1,4], index: 4, kind: input, shape index: {}]
  %s5 = inlined_call_operand.vmem [shape: f32[4,128], index: 5, kind: input, shape index: {}]
  %s6 = inlined_call_operand.vmem [shape: f32[8,128], index: 6, kind: output, shape index: {0}]
  %s7 = inlined_call_operand.vmem [shape: f32[8,4], index: 7, kind: output, shape index: {1}]
  %8 = xla_tuple %s6, %s7
  %s9 = sld [smem:[#allocation0]]
  $region42: #{spatial_attention.1} parent=0
    _
  %s11 = ssub.s32 1, %s9
  %s12 = scalar_select 0, %s11, %s9
  // Predicated region
  $region2: #{spatial_attention.1} parent=0 // pred_check
    _
  $region3: #{spatial_attention.1} parent=0 // pred_check_branch
    %14 = sbr.rel (0) target = $region5
  $region4: #{spatial_attention.1} parent=0 // pred_region
    _
  $region5: #{spatial_attention.1} parent=0 // pred_fallthru
    _
  // Predicated region
  $region6: #{spatial_attention.1} parent=0 // pred_check
    _
  $region7: #{spatial_attention.1} parent=0 // pred_check_branch
    %16 = sbr.rel (0) target = $region9
  $region8: #{spatial_attention.1} parent=0 // pred_region
    _
  $region9: #{spatial_attention.1} parent=0 // pred_fallthru
    _
  // Predicated region
  $region10: #{spatial_attention.1} parent=0 // pred_check
    _
  $region11: #{spatial_attention.1} parent=0 // pred_check_branch
    %18 = sbr.rel (0) target = $region13
  $region12: #{spatial_attention.1} parent=0 // pred_region
    _
  $region13: #{spatial_attention.1} parent=0 // pred_fallthru
    _
  // Predicated region
  $region14: #{spatial_attention.1} parent=0 // pred_check
    _
  $region15: #{spatial_attention.1} parent=0 // pred_check_branch
    %20 = sbr.rel (0) target = $region17
  $region16: #{spatial_attention.1} parent=0 // pred_region
    _
  $region17: #{spatial_attention.1} parent=0 // pred_fallthru
    _
  // Predicated region
  $region18: #{spatial_attention.1} parent=0 // pred_check
    _
  $region19: #{spatial_attention.1} parent=0 // pred_check_branch
    %22 = sbr.rel (0) target = $region21
  $region20: #{spatial_attention.1} parent=0 // pred_region
    _
  $region21: #{spatial_attention.1} parent=0 // pred_fallthru
    _
  // Predicated region
  $region22: #{spatial_attention.1} parent=0 // pred_check
    _
  $region23: #{spatial_attention.1} parent=0 // pred_check_branch
    %24 = sbr.rel (0) target = $region25
  $region24: #{spatial_attention.1} parent=0 // pred_region
    _
  $region25: #{spatial_attention.1} parent=0 // pred_fallthru
    _
  %v25 = vld [vmem:[%s0] sm:$0xff]
  %v26 = vld [vmem:[%s1] sm:$0xff]
  %v27 = vld [vmem:[%s1 + $0x8] sm:$0xff]
  %v28 = vld [vmem:[%s1 + $0x10] sm:$0xff]
  %v29 = vld [vmem:[%s1 + $0x18] sm:$0xff]
  %v30 = vld [vmem:[%s1 + $0x20] sm:$0xff]
  %v31 = vld [vmem:[%s1 + $0x28] sm:$0xff]
  %v32 = vld [vmem:[%s1 + $0x30] sm:$0xff]
  %v33 = vld [vmem:[%s1 + $0x38] sm:$0xff]
  %v34 = vld [vmem:[%s1 + $0x40] sm:$0xff]
  %v35 = vld [vmem:[%s1 + $0x48] sm:$0xff]
  %v36 = vld [vmem:[%s1 + $0x50] sm:$0xff]
  %v37 = vld [vmem:[%s1 + $0x58] sm:$0xff]
  %v38 = vld [vmem:[%s1 + $0x60] sm:$0xff]
  %v39 = vld [vmem:[%s1 + $0x68] sm:$0xff]
  %v40 = vld [vmem:[%s1 + $0x70] sm:$0xff]
  %v41 = vld [vmem:[%s1 + $0x78] sm:$0xff]
  %v42 = vld [vmem:[%s2] sm:$0x1]
  %v44 = vlaneseq
  %v45 = vshrl.u32 %v44, 7
  %v46 = vsub.s32 0, %v45
  %v47 = vrot.slane %v42, %v46
  %49 = vmatprep.subr.mxu0 0.0
  %50 = vmatpush1.msra.mxu0 %v41
  %51 = vmatprep.subr.mxu0 0.0
  %52 = vmatpush1.msra.mxu0 %v40
  %53 = vmatprep.subr.mxu0 0.0
  %54 = vmatpush1.msra.mxu0 %v39
  %55 = vmatprep.subr.mxu0 0.0
  %56 = vmatpush1.msra.mxu0 %v38
  %57 = vmatprep.subr.mxu0 0.0
  %58 = vmatpush1.msra.mxu0 %v37
  %59 = vmatprep.subr.mxu0 0.0
  %60 = vmatpush1.msra.mxu0 %v36
  %61 = vmatprep.subr.mxu0 0.0
  %62 = vmatpush1.msra.mxu0 %v35
  %63 = vmatprep.subr.mxu0 0.0
  %64 = vmatpush1.msra.mxu0 %v34
  %65 = vmatprep.subr.mxu0 0.0
  %66 = vmatpush1.msra.mxu0 %v33
  %67 = vmatprep.subr.mxu0 0.0
  %68 = vmatpush1.msra.mxu0 %v32
  %69 = vmatprep.subr.mxu0 0.0
  %70 = vmatpush1.msra.mxu0 %v31
  %71 = vmatprep.subr.mxu0 0.0
  %72 = vmatpush1.msra.mxu0 %v30
  %73 = vmatprep.subr.mxu0 0.0
  %74 = vmatpush1.msra.mxu0 %v29
  %75 = vmatprep.subr.mxu0 0.0
  %76 = vmatpush1.msra.mxu0 %v28
  %77 = vmatprep.subr.mxu0 0.0
  %78 = vmatpush1.msra.mxu0 %v27
  %79 = vmatprep.subr.mxu0 0.0
  %80 = vmatpush1.msra.mxu0 %v26
  %81 = vmatprep.subr.mxu0 0.0
  %82 = vmatpush2.msra.mxu0 0.0
  %83 = vmatprep.subr.mxu0 0.0
  %84 = vmatpush2.msra.mxu0 0.0
  %85 = vmatprep.subr.mxu0 0.0
  %86 = vmatpush2.msra.mxu0 0.0
  %87 = vmatprep.subr.mxu0 0.0
  %88 = vmatpush2.msra.mxu0 0.0
  %89 = vmatprep.subr.mxu0 0.0
  %90 = vmatpush2.msra.mxu0 0.0
  %91 = vmatprep.subr.mxu0 0.0
  %92 = vmatpush2.msra.mxu0 0.0
  %93 = vmatprep.subr.mxu0 0.0
  %94 = vmatpush2.msra.mxu0 0.0
  %95 = vmatprep.subr.mxu0 0.0
  %96 = vmatpush2.msra.mxu0 0.0
  %97 = vmatprep.subr.mxu0 0.0
  %98 = vmatpush2.msra.mxu0 0.0
  %99 = vmatprep.subr.mxu0 0.0
  %100 = vmatpush2.msra.mxu0 0.0
  %101 = vmatprep.subr.mxu0 0.0
  %102 = vmatpush2.msra.mxu0 0.0
  %103 = vmatprep.subr.mxu0 0.0
  %104 = vmatpush2.msra.mxu0 0.0
  %105 = vmatprep.subr.mxu0 0.0
  %106 = vmatpush2.msra.mxu0 0.0
  %107 = vmatprep.subr.mxu0 0.0
  %108 = vmatpush2.msra.mxu0 0.0
  %109 = vmatprep.subr.mxu0 0.0
  %110 = vmatpush2.msra.mxu0 0.0
  %111 = vmatprep.subr.mxu0 0.0
  %112 = vmatpush2.msra.mxu0 0.0
  %113 = vmatprep.mubr.f32.mxu0 0.0
  %114 = vmatmul.mubr.f32.gmra.mxu0 %v25
  %v115 = vpop.f32.mrf.mxu0
  %v116 = vadd.f32 %v47, %v115
  %v117 = vpop.f32.mrf.mxu0
  %118 = vdwg.mxu0
  %v119 = vmax.f32 %v116, 0.0
  %v120 = vld [vmem:[%s3] sm:$0xff]
  %v121 = vld [vmem:[%s3 + $0x8] sm:$0xff]
  %v122 = vld [vmem:[%s3 + $0x10] sm:$0xff]
  %v123 = vld [vmem:[%s3 + $0x18] sm:$0xff]
  %v124 = vld [vmem:[%s3 + $0x20] sm:$0xff]
  %v125 = vld [vmem:[%s3 + $0x28] sm:$0xff]
  %v126 = vld [vmem:[%s3 + $0x30] sm:$0xff]
  %v127 = vld [vmem:[%s3 + $0x38] sm:$0xff]
  %v128 = vld [vmem:[%s4] sm:$0x1]
  %v130 = vlaneseq
  %v131 = vshrl.u32 %v130, 7
  %v132 = vsub.s32 0, %v131
  %v133 = vrot.slane %v128, %v132
  %vm135 = vcmask 523264
  %v137 = vsel %vm135, %v119, 0
  %139 = vmatprep.subr.mxu0 0.0
  %140 = vmatpush1.msra.mxu0 0.0
  %141 = vmatprep.subr.mxu0 0.0
  %142 = vmatpush1.msra.mxu0 0.0
  %143 = vmatprep.subr.mxu0 0.0
  %144 = vmatpush1.msra.mxu0 0.0
  %145 = vmatprep.subr.mxu0 0.0
  %146 = vmatpush1.msra.mxu0 0.0
  %147 = vmatprep.subr.mxu0 0.0
  %148 = vmatpush1.msra.mxu0 0.0
  %149 = vmatprep.subr.mxu0 0.0
  %150 = vmatpush1.msra.mxu0 0.0
  %151 = vmatprep.subr.mxu0 0.0
  %152 = vmatpush1.msra.mxu0 0.0
  %153 = vmatprep.subr.mxu0 0.0
  %154 = vmatpush1.msra.mxu0 0.0
  %155 = vmatprep.subr.mxu0 0.0
  %156 = vmatpush1.msra.mxu0 %v127
  %157 = vmatprep.subr.mxu0 0.0
  %158 = vmatpush1.msra.mxu0 %v126
  %159 = vmatprep.subr.mxu0 0.0
  %160 = vmatpush1.msra.mxu0 %v125
  %161 = vmatprep.subr.mxu0 0.0
  %162 = vmatpush1.msra.mxu0 %v124
  %163 = vmatprep.subr.mxu0 0.0
  %164 = vmatpush1.msra.mxu0 %v123
  %165 = vmatprep.subr.mxu0 0.0
  %166 = vmatpush1.msra.mxu0 %v122
  %167 = vmatprep.subr.mxu0 0.0
  %168 = vmatpush1.msra.mxu0 %v121
  %169 = vmatprep.subr.mxu0 0.0
  %170 = vmatpush1.msra.mxu0 %v120
  %171 = vmatprep.subr.mxu0 0.0
  %172 = vmatpush2.msra.mxu0 0.0
  %173 = vmatprep.subr.mxu0 0.0
  %174 = vmatpush2.msra.mxu0 0.0
  %175 = vmatprep.subr.mxu0 0.0
  %176 = vmatpush2.msra.mxu0 0.0
  %177 = vmatprep.subr.mxu0 0.0
  %178 = vmatpush2.msra.mxu0 0.0
  %179 = vmatprep.subr.mxu0 0.0
  %180 = vmatpush2.msra.mxu0 0.0
  %181 = vmatprep.subr.mxu0 0.0
  %182 = vmatpush2.msra.mxu0 0.0
  %183 = vmatprep.subr.mxu0 0.0
  %184 = vmatpush2.msra.mxu0 0.0
  %185 = vmatprep.subr.mxu0 0.0
  %186 = vmatpush2.msra.mxu0 0.0
  %187 = vmatprep.subr.mxu0 0.0
  %188 = vmatpush2.msra.mxu0 0.0
  %189 = vmatprep.subr.mxu0 0.0
  %190 = vmatpush2.msra.mxu0 0.0
  %191 = vmatprep.subr.mxu0 0.0
  %192 = vmatpush2.msra.mxu0 0.0
  %193 = vmatprep.subr.mxu0 0.0
  %194 = vmatpush2.msra.mxu0 0.0
  %195 = vmatprep.subr.mxu0 0.0
  %196 = vmatpush2.msra.mxu0 0.0
  %197 = vmatprep.subr.mxu0 0.0
  %198 = vmatpush2.msra.mxu0 0.0
  %199 = vmatprep.subr.mxu0 0.0
  %200 = vmatpush2.msra.mxu0 0.0
  %201 = vmatprep.subr.mxu0 0.0
  %202 = vmatpush2.msra.mxu0 0.0
  %203 = vmatprep.mubr.f32.mxu0 0.0
  %204 = vmatmul.mubr.f32.gmra.mxu0 %v137
  %v205 = vpop.f32.mrf.mxu0
  %v206 = vadd.f32 %v133, %v205
  %v207 = vpop.f32.mrf.mxu0
  %208 = vdwg.mxu0
  %v209 = vxor.u32 %v206, 2147483648
  %v210 = vmul.f32 %v209, 1.442695
  %v211 = vpow.pop %v210
  %v212 = vadd.f32 %v211, 1.0
  %v213 = vrcp.pop %v212
  %v214 = vmul.f32 1.0, %v213
  %v215 = vld [vmem:[%s5] sm:$0xf]
  %vm216 = vcmask 31744
  %v218 = vsel %vm216, %v214, 0
  %vm220 = vcmask 1043456
  %v222 = vsel %vm220, %v215, 0
  %224 = vmatprep.subr.mxu0 0.0
  %225 = vmatpush1.msra.mxu0 0.0
  %226 = vmatprep.subr.mxu0 0.0
  %227 = vmatpush1.msra.mxu0 0.0
  %228 = vmatprep.subr.mxu0 0.0
  %229 = vmatpush1.msra.mxu0 0.0
  %230 = vmatprep.subr.mxu0 0.0
  %231 = vmatpush1.msra.mxu0 0.0
  %232 = vmatprep.subr.mxu0 0.0
  %233 = vmatpush1.msra.mxu0 0.0
  %234 = vmatprep.subr.mxu0 0.0
  %235 = vmatpush1.msra.mxu0 0.0
  %236 = vmatprep.subr.mxu0 0.0
  %237 = vmatpush1.msra.mxu0 0.0
  %238 = vmatprep.subr.mxu0 0.0
  %239 = vmatpush1.msra.mxu0 0.0
  %240 = vmatprep.subr.mxu0 0.0
  %241 = vmatpush1.msra.mxu0 0.0
  %242 = vmatprep.subr.mxu0 0.0
  %243 = vmatpush1.msra.mxu0 0.0
  %244 = vmatprep.subr.mxu0 0.0
  %245 = vmatpush1.msra.mxu0 0.0
  %246 = vmatprep.subr.mxu0 0.0
  %247 = vmatpush1.msra.mxu0 0.0
  %248 = vmatprep.subr.mxu0 0.0
  %249 = vmatpush1.msra.mxu0 0.0
  %250 = vmatprep.subr.mxu0 0.0
  %251 = vmatpush1.msra.mxu0 0.0
  %252 = vmatprep.subr.mxu0 0.0
  %253 = vmatpush1.msra.mxu0 0.0
  %254 = vmatprep.subr.mxu0 0.0
  %255 = vmatpush1.msra.mxu0 %v222
  %256 = vmatprep.subr.mxu0 0.0
  %257 = vmatpush2.msra.mxu0 0.0
  %258 = vmatprep.subr.mxu0 0.0
  %259 = vmatpush2.msra.mxu0 0.0
  %260 = vmatprep.subr.mxu0 0.0
  %261 = vmatpush2.msra.mxu0 0.0
  %262 = vmatprep.subr.mxu0 0.0
  %263 = vmatpush2.msra.mxu0 0.0
  %264 = vmatprep.subr.mxu0 0.0
  %265 = vmatpush2.msra.mxu0 0.0
  %266 = vmatprep.subr.mxu0 0.0
  %267 = vmatpush2.msra.mxu0 0.0
  %268 = vmatprep.subr.mxu0 0.0
  %269 = vmatpush2.msra.mxu0 0.0
  %270 = vmatprep.subr.mxu0 0.0
  %271 = vmatpush2.msra.mxu0 0.0
  %272 = vmatprep.subr.mxu0 0.0
  %273 = vmatpush2.msra.mxu0 0.0
  %274 = vmatprep.subr.mxu0 0.0
  %275 = vmatpush2.msra.mxu0 0.0
  %276 = vmatprep.subr.mxu0 0.0
  %277 = vmatpush2.msra.mxu0 0.0
  %278 = vmatprep.subr.mxu0 0.0
  %279 = vmatpush2.msra.mxu0 0.0
  %280 = vmatprep.subr.mxu0 0.0
  %281 = vmatpush2.msra.mxu0 0.0
  %282 = vmatprep.subr.mxu0 0.0
  %283 = vmatpush2.msra.mxu0 0.0
  %284 = vmatprep.subr.mxu0 0.0
  %285 = vmatpush2.msra.mxu0 0.0
  %286 = vmatprep.subr.mxu0 0.0
  %287 = vmatpush2.msra.mxu0 0.0
  %288 = vmatprep.mubr.f32.mxu0 0.0
  %289 = vmatmul.mubr.f32.gmra.mxu0 %v218
  %v290 = vpop.f32.mrf.mxu0
  %v291 = vadd.f32 0.0, %v290
  %v292 = vpop.f32.mrf.mxu0
  %293 = vdwg.mxu0
  %v294 = vmul.f32 %v25, %v291
  %295 = vst [vmem:[%s6] sm:$0xff] %v294
  %296 = vst.msk [vmem:[%s7] sm:$0xff] %vm216, %v214
  // Predicated region
  $region26: #{spatial_attention.1} parent=0 // pred_check
    _
  $region27: #{spatial_attention.1} parent=0 // pred_check_branch
    %298 = sbr.rel (0) target = $region29
  $region28: #{spatial_attention.1} parent=0 // pred_region
    _
  $region29: #{spatial_attention.1} parent=0 // pred_fallthru
    _
  // Predicated region
  $region30: #{spatial_attention.1} parent=0 // pred_check
    _
  $region31: #{spatial_attention.1} parent=0 // pred_check_branch
    %300 = sbr.rel (0) target = $region33
  $region32: #{spatial_attention.1} parent=0 // pred_region
    _
  $region33: #{spatial_attention.1} parent=0 // pred_fallthru
    _
  // Predicated region
  $region34: #{spatial_attention.1} parent=0 // pred_check
    _
  $region35: #{spatial_attention.1} parent=0 // pred_check_branch
    %302 = sbr.rel (0) target = $region37
  $region36: #{spatial_attention.1} parent=0 // pred_region
    _
  $region37: #{spatial_attention.1} parent=0 // pred_fallthru
    _
  // Predicated region
  $region38: #{spatial_attention.1} parent=0 // pred_check
    _
  $region39: #{spatial_attention.1} parent=0 // pred_check_branch
    %304 = sbr.rel (0) target = $region41
  $region40: #{spatial_attention.1} parent=0 // pred_region
    _
  $region41: #{spatial_attention.1} parent=0 // pred_fallthru
    _

</llo_original>
